<compile_context>
chip_gen: v5e
topology: v5e:2x2
jax: 0.10.0
libtpu: 0.0.40
codegen_flags: <defaults>
</compile_context>

<pallas_src>
import math
from functools import partial

import jax
import jax.numpy as jnp
from jax.experimental import pallas as pl
from jax.experimental.pallas import tpu as pltpu


# ------------------------------ kernels ------------------------------------


def _lora_linear_kernel(x_ref, wt_ref, b_ref, at_ref, bt_ref, o_ref,
                        acc_ref, aout_ref, *, scaling):
    # x_ref : (tm, tk) bf16   wt_ref: (tk, tn) bf16   b_ref : (1, tn) f32
    # at_ref: (tk, R)  bf16   bt_ref: (R, tn)  bf16   o_ref : (tm, tn)
    # acc_ref: (tm, tn) f32   aout_ref: (tm, R) f32 (persists across the j loop)
    j = pl.program_id(1)
    k = pl.program_id(2)

    @pl.when(k == 0)
    def _():
        acc_ref[...] = jnp.zeros_like(acc_ref)

    # The LoRA A-path accumulator depends only on (i, k): zero + accumulate it only on
    # the first j tile and reuse it for all other j tiles of the same i.
    @pl.when((j == 0) & (k == 0))
    def _():
        aout_ref[...] = jnp.zeros_like(aout_ref)

    x = x_ref[...]
    # Frozen linear path partial sum (bf16 x bf16 -> f32 on the MXU).
    acc_ref[...] += jnp.dot(x, wt_ref[...], preferred_element_type=jnp.float32)

    @pl.when(j == 0)
    def _():
        aout_ref[...] += jnp.dot(x, at_ref[...], preferred_element_type=jnp.float32)

    @pl.when(k == pl.num_programs(2) - 1)
    def _():
        # Scale the small (tm, R) intermediate (not the (tm, tn) result), then feed the
        # MXU bf16 operands for the B matmul; accumulation stays f32.
        a_scaled = (aout_ref[...] * scaling).astype(bt_ref.dtype)
        lora = jnp.dot(a_scaled, bt_ref[...], preferred_element_type=jnp.float32)
        out = acc_ref[...] + b_ref[...].astype(jnp.float32) + lora
        o_ref[...] = out.astype(o_ref.dtype)


def _linear_bias_kernel(x_ref, wt_ref, b_ref, o_ref, acc_ref):
    # Merged-weight fast path: plain GEMM + bias.
    k = pl.program_id(2)

    @pl.when(k == 0)
    def _():
        acc_ref[...] = jnp.zeros_like(acc_ref)

    acc_ref[...] += jnp.dot(x_ref[...], wt_ref[...], preferred_element_type=jnp.float32)

    @pl.when(k == pl.num_programs(2) - 1)
    def _():
        o_ref[...] = (acc_ref[...] + b_ref[...].astype(jnp.float32)).astype(o_ref.dtype)


# --------------------------- weight preparation -----------------------------


def prepare_lora_weights(w, b, lora_a, lora_b, *, compute_dtype=jnp.bfloat16):
    """One-time (parameter-load-time) layout + dtype conversion.

    w: (out, in), b: (out,), lora_a: (rank, in), lora_b: (out, rank)
    Returns kernel operands: wt (in, out) bf16, b2d (1, out) f32,
    at (in, rank) bf16, bt (rank, out) bf16."""
    wt = jnp.transpose(w).astype(compute_dtype)
    at = jnp.transpose(lora_a).astype(compute_dtype)
    bt = jnp.transpose(lora_b).astype(compute_dtype)
    b2d = b.reshape(1, -1).astype(jnp.float32)
    return wt, b2d, at, bt


def prepare_merged_weights(w, b, lora_a, lora_b, *, alpha, rank,
                           compute_dtype=jnp.bfloat16):
    """Fold the (frozen) adapter into the base weight: W_merged = W + scaling * B @ A.

    Valid when a single frozen adapter is served at inference (no hot-swapping)."""
    scaling = alpha / rank
    w32 = w.astype(jnp.float32)
    delta = scaling * (lora_b.astype(jnp.float32) @ lora_a.astype(jnp.float32))
    wt_merged = jnp.transpose(w32 + delta).astype(compute_dtype)
    return wt_merged, b.reshape(1, -1).astype(jnp.float32)


# ------------------------------ tile planning -------------------------------


def _nbytes(shape, dtype):
    return math.prod(shape) * jnp.dtype(dtype).itemsize


def _pick_tile(dim, target, align):
    """Largest tile <= target that is `align`-aligned and divides dim, else full dim."""
    if dim <= target:
        return dim
    t = (target // align) * align
    while t >= align:
        if dim % t == 0:
            return t
        t -= align
    return dim


def _vmem_cap_bytes():
    """Per-generation VMEM cap (75% of capacity: ~48 MiB v7x, ~96 MiB v5e/v6e)."""
    try:
        info = pltpu.get_tpu_info()
        cap = getattr(info, "vmem_capacity_bytes", None)
        if cap:
            return int(0.75 * cap)
    except Exception:
        pass
    return 48 * 1024 * 1024  # conservative fallback (fits v7x's 64 MiB per-TC VMEM)


def _plan_tiles(m, n_out, k_in, rank, x_dtype, w_dtype, out_dtype, cap,
                tm_target=512, tn_target=1024, tk_target=512):
    """Pick (tm, tn, tk) fitting the VMEM cap; shrink tk -> tm -> tn, else raise."""
    sub_align = 16 if jnp.dtype(x_dtype).itemsize <= 2 else 8
    r_pad = max(rank, 128)  # rank axis pads to 128 lanes in VMEM
    tm_t, tn_t, tk_t = tm_target, tn_target, tk_target
    for _ in range(16):
        tm = _pick_tile(m, tm_t, sub_align)
        tn = _pick_tile(n_out, tn_t, 128)
        tk = _pick_tile(k_in, tk_t, 128)
        est = (
            2 * (_nbytes((tm, tk), x_dtype)            # x tile (double-buffered)
                 + _nbytes((tm, tn), out_dtype)        # output tile
                 + _nbytes((tk, tn), w_dtype)          # W^T tile
                 + _nbytes((8, tn), jnp.float32)       # bias tile (sublane-padded)
                 + _nbytes((tk, r_pad), w_dtype)       # A^T tile (lane-padded)
                 + _nbytes((max(rank, 16), tn), w_dtype))  # B^T tile
            + _nbytes((tm, tn), jnp.float32)           # f32 accumulator
            + _nbytes((tm, r_pad), jnp.float32))       # LoRA A-path accumulator
        if est <= cap:
            return tm, tn, tk, est
        if tk_t > 128:
            tk_t //= 2
        elif tm_t > 32:
            tm_t //= 2
        elif tn_t > 128:
            tn_t //= 2
        else:
            break
    raise ValueError(
        f"No tile plan for (m={m}, n={n_out}, k={k_in}) fits the VMEM cap "
        f"({cap} bytes); dims may lack 128-aligned divisors.")


# ------------------------------ wrappers -------------------------------------


def lora_linear_forward(x, wt, b2d, at, bt, *, alpha, rank,
                        tile_targets=(512, 1024, 512)):
    """Fused LoRA linear. x: (..., in). wt: (in, out) bf16, b2d: (1, out) f32,
    at: (in, rank) bf16, bt: (rank, out) bf16 (pre-converted once)."""
    orig_shape = x.shape
    k_in = orig_shape[-1]
    n_out = wt.shape[1]
    m = math.prod(orig_shape[:-1])
    scaling = alpha / rank
    out_dtype = x.dtype

    x2d = x.reshape(m, k_in)
    if x2d.dtype != wt.dtype:
        x2d = x2d.astype(wt.dtype)  # feed the MXU bf16 operands

    cap = _vmem_cap_bytes()
    tm, tn, tk, _ = _plan_tiles(m, n_out, k_in, rank, x2d.dtype, wt.dtype,
                                out_dtype, cap, *tile_targets)
    gi, gj, gk = m // tm, n_out // tn, k_in // tk
    grid = (gi, gj, gk)

    flops = 2 * m * n_out * k_in + 2 * m * k_in * rank + 2 * m * rank * n_out
    bytes_accessed = (
        gj * x2d.size * x2d.dtype.itemsize            # x re-streamed per j tile
        + gi * wt.size * wt.dtype.itemsize            # W^T re-streamed per i tile
        + gi * b2d.size * b2d.dtype.itemsize
        + gi * gj * at.size * at.dtype.itemsize
        + gi * bt.size * bt.dtype.itemsize
        + m * n_out * jnp.dtype(out_dtype).itemsize)  # output write

    out2d = pl.pallas_call(
        partial(_lora_linear_kernel, scaling=scaling),
        out_shape=jax.ShapeDtypeStruct((m, n_out), out_dtype),
        grid_spec=pltpu.PrefetchScalarGridSpec(
            num_scalar_prefetch=0,
            grid=grid,
            in_specs=[
                pl.BlockSpec((tm, tk), lambda i, j, k: (i, k)),      # x
                pl.BlockSpec((tk, tn), lambda i, j, k: (k, j)),      # W^T
                pl.BlockSpec((1, tn), lambda i, j, k: (0, j)),       # bias
                pl.BlockSpec((tk, rank), lambda i, j, k: (k, 0)),    # A^T
                pl.BlockSpec((rank, tn), lambda i, j, k: (0, j)),    # B^T
            ],
            out_specs=pl.BlockSpec((tm, tn), lambda i, j, k: (i, j)),
            scratch_shapes=[
                pltpu.VMEM((tm, tn), jnp.float32),    # frozen-path accumulator
                pltpu.VMEM((tm, rank), jnp.float32),  # LoRA A-path accumulator
            ],
        ),
        compiler_params=pltpu.CompilerParams(
            # "arbitrary" on j is REQUIRED for the j==0 A-path hoist (aout persists
            # across j); a megacore split may only happen on i.
            dimension_semantics=("parallel", "arbitrary", "arbitrary"),
            vmem_limit_bytes=int(cap),
        ),
        cost_estimate=pl.CostEstimate(
            flops=flops, transcendentals=0, bytes_accessed=bytes_accessed),
    )(x2d, wt, b2d, at, bt)

    return out2d.reshape(*orig_shape[:-1], n_out)


def linear_forward(x, wt, b2d, *, tile_targets=(512, 1024, 512)):
    """Merged-weight fast path: plain GEMM + bias with bf16 operands."""
    orig_shape = x.shape
    k_in = orig_shape[-1]
    n_out = wt.shape[1]
    m = math.prod(orig_shape[:-1])
    out_dtype = x.dtype

    x2d = x.reshape(m, k_in)
    if x2d.dtype != wt.dtype:
        x2d = x2d.astype(wt.dtype)

    cap = _vmem_cap_bytes()
    tm, tn, tk, _ = _plan_tiles(m, n_out, k_in, 8, x2d.dtype, wt.dtype,
                                out_dtype, cap, *tile_targets)
    gi, gj, gk = m // tm, n_out // tn, k_in // tk

    flops = 2 * m * n_out * k_in
    bytes_accessed = (gj * x2d.size * x2d.dtype.itemsize
                      + gi * wt.size * wt.dtype.itemsize
                      + gi * b2d.size * b2d.dtype.itemsize
                      + m * n_out * jnp.dtype(out_dtype).itemsize)

    out2d = pl.pallas_call(
        _linear_bias_kernel,
        out_shape=jax.ShapeDtypeStruct((m, n_out), out_dtype),
        grid_spec=pltpu.PrefetchScalarGridSpec(
            num_scalar_prefetch=0,
            grid=(gi, gj, gk),
            in_specs=[
                pl.BlockSpec((tm, tk), lambda i, j, k: (i, k)),
                pl.BlockSpec((tk, tn), lambda i, j, k: (k, j)),
                pl.BlockSpec((1, tn), lambda i, j, k: (0, j)),
            ],
            out_specs=pl.BlockSpec((tm, tn), lambda i, j, k: (i, j)),
            scratch_shapes=[pltpu.VMEM((tm, tn), jnp.float32)],
        ),
        compiler_params=pltpu.CompilerParams(
            dimension_semantics=("parallel", "parallel", "arbitrary"),
            vmem_limit_bytes=int(cap),
        ),
        cost_estimate=pl.CostEstimate(
            flops=flops, transcendentals=0, bytes_accessed=bytes_accessed),
    )(x2d, wt, b2d)

    return out2d.reshape(*orig_shape[:-1], n_out)


# --------------------------------- test --------------------------------------


def _kaiming_uniform(key, shape, a=math.sqrt(5)):
    # Matches nn.init.kaiming_uniform_(w, a=sqrt(5)) for a (fan_out, fan_in) weight.
    fan_in = shape[1]
    gain = math.sqrt(2.0 / (1.0 + a * a))
    bound = gain * math.sqrt(3.0 / fan_in)
    return jax.random.uniform(key, shape, jnp.float32, minval=-bound, maxval=bound)


def _ref_f32(x, w, b, lora_a, lora_b, scaling):
    return x @ w.T + b + scaling * ((x @ lora_a.T) @ lora_b.T)


def _ref_bf16_sim(x, wt, b2d, at, bt, scaling):
    """Reference that mirrors the kernel's bf16 operands / f32 accumulation."""
    xb = x.astype(jnp.bfloat16).astype(jnp.float32)
    wtf, atf, btf = (wt.astype(jnp.float32), at.astype(jnp.float32),
                     bt.astype(jnp.float32))
    a_out = (xb @ atf) * scaling
    a_out = a_out.astype(jnp.bfloat16).astype(jnp.float32)
    return xb @ wtf + b2d + a_out @ btf


if __name__ == "__main__":
    key = jax.random.PRNGKey(0)
    k1, k2, k3, k4, k5, k6, k7, k8, k9 = jax.random.split(key, 9)

    # ---- Test 1: module-default init (B = zeros), single grid point ----------
    batch, seq, in_f, out_f, rank, alpha = 2, 8, 32, 32, 16, 16
    scaling = alpha / rank

    x1 = jax.random.normal(k1, (batch, seq, in_f), jnp.float32)
    w1 = _kaiming_uniform(k2, (out_f, in_f))
    b1 = jax.random.uniform(k3, (out_f,), jnp.float32,
                            minval=-1.0 / math.sqrt(in_f), maxval=1.0 / math.sqrt(in_f))
    a1 = _kaiming_uniform(k4, (rank, in_f))
    bB1 = jnp.zeros((out_f, rank), jnp.float32)          # nn.init.zeros_ (module init)

    wt1, b2d1, at1, bt1 = prepare_lora_weights(w1, b1, a1, bB1)
    out1 = jax.block_until_ready(
        lora_linear_forward(x1, wt1, b2d1, at1, bt1, alpha=alpha, rank=rank))
    ref1 = _ref_f32(x1, w1, b1, a1, bB1, scaling)
    assert out1.shape == (batch, seq, out_f)
    assert jnp.allclose(out1, ref1, atol=2e-2, rtol=1e-2)

    # ---- Test 2: multi-tile grid (exercises k-accumulation + j==0 A-path hoist)
    batch2, seq2, in_f2, out_f2 = 2, 16, 256, 384
    x2 = jax.random.normal(k5, (batch2, seq2, in_f2), jnp.float32)
    w2 = _kaiming_uniform(k6, (out_f2, in_f2))
    b2 = jax.random.uniform(k7, (out_f2,), jnp.float32,
                            minval=-1.0 / math.sqrt(in_f2), maxval=1.0 / math.sqrt(in_f2))
    a2 = _kaiming_uniform(k8, (rank, in_f2))
    bB2 = 0.5 * jax.random.normal(k9, (out_f2, rank), jnp.float32)   # "trained" adapter

    wt2, b2d2, at2, bt2 = prepare_lora_weights(w2, b2, a2, bB2)
    # Small tile targets force a (2, 3, 2) grid at these small shapes.
    out2 = jax.block_until_ready(
        lora_linear_forward(x2, wt2, b2d2, at2, bt2, alpha=alpha, rank=rank,
                            tile_targets=(16, 128, 128)))
    x2f = x2.reshape(-1, in_f2)
    ref2_sim = _ref_bf16_sim(x2f, wt2, b2d2, at2, bt2, scaling).reshape(out2.shape)
    ref2_f32 = _ref_f32(x2, w2, b2, a2, bB2, scaling)
    assert out2.shape == (batch2, seq2, out_f2)
    assert jnp.allclose(out2, ref2_sim, atol=2e-2, rtol=2e-2)
    assert jnp.allclose(out2, ref2_f32, atol=2e-1, rtol=5e-2)

    # ---- Test 3: merged-weight fast path matches its own reference ------------
    wtm, b2dm = prepare_merged_weights(w2, b2, a2, bB2, alpha=alpha, rank=rank)
    out3 = jax.block_until_ready(
        linear_forward(x2, wtm, b2dm, tile_targets=(16, 128, 128)))
    xb = x2f.astype(jnp.bfloat16).astype(jnp.float32)
    ref3 = (xb @ wtm.astype(jnp.float32) + b2dm).reshape(out3.shape)
    assert out3.shape == (batch2, seq2, out_f2)
    assert jnp.allclose(out3, ref3, atol=2e-2, rtol=2e-2)
    assert jnp.allclose(out3, ref2_f32, atol=2e-1, rtol=5e-2)

    print("KERNEL_OK")
</pallas_src>

<mosaic_0001>
module attributes {stable_mosaic.version = 11 : i64} {
  func.func @_lora_linear_kernel(%arg0: i32, %arg1: i32, %arg2: i32, %arg3: memref<16x32xbf16, #tpu.memory_space<vmem>>, %arg4: memref<32x32xbf16, #tpu.memory_space<vmem>>, %arg5: memref<1x32xf32, #tpu.memory_space<vmem>>, %arg6: memref<32x16xbf16, #tpu.memory_space<vmem>>, %arg7: memref<16x32xbf16, #tpu.memory_space<vmem>>, %arg8: memref<16x32xf32, #tpu.memory_space<vmem>>, %arg9: memref<16x32xf32, #tpu.memory_space<vmem>>, %arg10: memref<16x16xf32, #tpu.memory_space<vmem>>) attributes {dimension_semantics = [#tpu.dimension_semantics<parallel>, #tpu.dimension_semantics<arbitrary>, #tpu.dimension_semantics<arbitrary>], iteration_bounds = array<i64: 1, 1, 1>, scalar_prefetch = 0 : i64, scratch_operands = 2 : i64, tpu.core_type = #tpu.core_type<tc>, window_params = [{transform_indices = @transform_0, window_bounds = array<i64: 16, 32>}, {transform_indices = @transform_1, window_bounds = array<i64: 32, 32>}, {transform_indices = @transform_2, window_bounds = array<i64: 1, 32>}, {transform_indices = @transform_3, window_bounds = array<i64: 32, 16>}, {transform_indices = @transform_4, window_bounds = array<i64: 16, 32>}, {transform_indices = @transform_5, window_bounds = array<i64: 16, 32>}]} {
    %c0_i32 = arith.constant 0 : i32
    %0 = arith.cmpi eq, %arg2, %c0_i32 : i32
    %1 = arith.extui %0 : i1 to i32
    %c0_i32_0 = arith.constant 0 : i32
    %2 = arith.cmpi ne, %1, %c0_i32_0 : i32
    scf.if %2 {
      %cst_15 = arith.constant 0.000000e+00 : f32
      %20 = vector.broadcast %cst_15 : f32 to vector<16x32xf32>
      %c0_16 = arith.constant 0 : index
      %c0_17 = arith.constant 0 : index
      %21 = vector.load %arg9[%c0_16, %c0_17] : memref<16x32xf32, #tpu.memory_space<vmem>>, vector<16x32xf32>
      tpu.vector_store %arg9[%c0_16, %c0_17], %20 {strides = array<i32>} : memref<16x32xf32, #tpu.memory_space<vmem>>, vector<16x32xf32>,
    } else {
    }
    %c0_i32_1 = arith.constant 0 : i32
    %3 = arith.cmpi eq, %arg1, %c0_i32_1 : i32
    %c0_i32_2 = arith.constant 0 : i32
    %4 = arith.cmpi eq, %arg2, %c0_i32_2 : i32
    %5 = arith.andi %3, %4 : i1
    %6 = arith.extui %5 : i1 to i32
    %c0_i32_3 = arith.constant 0 : i32
    %7 = arith.cmpi ne, %6, %c0_i32_3 : i32
    scf.if %7 {
      %cst_15 = arith.constant 0.000000e+00 : f32
      %20 = vector.broadcast %cst_15 : f32 to vector<16x16xf32>
      %c0_16 = arith.constant 0 : index
      %c0_17 = arith.constant 0 : index
      %21 = vector.load %arg10[%c0_16, %c0_17] : memref<16x16xf32, #tpu.memory_space<vmem>>, vector<16x16xf32>
      tpu.vector_store %arg10[%c0_16, %c0_17], %20 {strides = array<i32>} : memref<16x16xf32, #tpu.memory_space<vmem>>, vector<16x16xf32>,
    } else {
    }
    %c0 = arith.constant 0 : index
    %c0_4 = arith.constant 0 : index
    %8 = vector.load %arg3[%c0, %c0_4] : memref<16x32xbf16, #tpu.memory_space<vmem>>, vector<16x32xbf16>
    %c0_5 = arith.constant 0 : index
    %c0_6 = arith.constant 0 : index
    %9 = vector.load %arg9[%c0_5, %c0_6] : memref<16x32xf32, #tpu.memory_space<vmem>>, vector<16x32xf32>
    %c0_7 = arith.constant 0 : index
    %c0_8 = arith.constant 0 : index
    %10 = vector.load %arg4[%c0_7, %c0_8] : memref<32x32xbf16, #tpu.memory_space<vmem>>, vector<32x32xbf16>
    %cst = arith.constant dense<0.000000e+00> : vector<16x32xf32>
    %11 = tpu.matmul %8, %10, %cst {dimension_numbers = #tpu.dot_dimension_numbers<[1], [0], [0], [1], [0, 0, 1, 1], [], []>} : vector<16x32xbf16>, vector<32x32xbf16>, vector<16x32xf32> -> vector<16x32xf32>
    %12 = arith.addf %9, %11 : vector<16x32xf32>
    %c0_9 = arith.constant 0 : index
    %c0_10 = arith.constant 0 : index
    %13 = vector.load %arg9[%c0_9, %c0_10] : memref<16x32xf32, #tpu.memory_space<vmem>>, vector<16x32xf32>
    tpu.vector_store %arg9[%c0_9, %c0_10], %12 {strides = array<i32>} : memref<16x32xf32, #tpu.memory_space<vmem>>, vector<16x32xf32>,
    %c0_i32_11 = arith.constant 0 : i32
    %14 = arith.cmpi eq, %arg1, %c0_i32_11 : i32
    %15 = arith.extui %14 : i1 to i32
    %c0_i32_12 = arith.constant 0 : i32
    %16 = arith.cmpi ne, %15, %c0_i32_12 : i32
    scf.if %16 {
      %c0_15 = arith.constant 0 : index
      %c0_16 = arith.constant 0 : index
      %20 = vector.load %arg10[%c0_15, %c0_16] : memref<16x16xf32, #tpu.memory_space<vmem>>, vector<16x16xf32>
      %c0_17 = arith.constant 0 : index
      %c0_18 = arith.constant 0 : index
      %21 = vector.load %arg6[%c0_17, %c0_18] : memref<32x16xbf16, #tpu.memory_space<vmem>>, vector<32x16xbf16>
      %cst_19 = arith.constant dense<0.000000e+00> : vector<16x16xf32>
      %22 = tpu.matmul %8, %21, %cst_19 {dimension_numbers = #tpu.dot_dimension_numbers<[1], [0], [0], [1], [0, 0, 1, 1], [], []>} : vector<16x32xbf16>, vector<32x16xbf16>, vector<16x16xf32> -> vector<16x16xf32>
      %23 = arith.addf %20, %22 : vector<16x16xf32>
      %c0_20 = arith.constant 0 : index
      %c0_21 = arith.constant 0 : index
      %24 = vector.load %arg10[%c0_20, %c0_21] : memref<16x16xf32, #tpu.memory_space<vmem>>, vector<16x16xf32>
      tpu.vector_store %arg10[%c0_20, %c0_21], %23 {strides = array<i32>} : memref<16x16xf32, #tpu.memory_space<vmem>>, vector<16x16xf32>,
    } else {
    }
    %c0_i32_13 = arith.constant 0 : i32
    %17 = arith.cmpi eq, %arg2, %c0_i32_13 : i32
    %18 = arith.extui %17 : i1 to i32
    %c0_i32_14 = arith.constant 0 : i32
    %19 = arith.cmpi ne, %18, %c0_i32_14 : i32
    scf.if %19 {
      %c0_15 = arith.constant 0 : index
      %c0_16 = arith.constant 0 : index
      %20 = vector.load %arg10[%c0_15, %c0_16] : memref<16x16xf32, #tpu.memory_space<vmem>>, vector<16x16xf32>
      %cst_17 = arith.constant 1.000000e+00 : f32
      %21 = vector.broadcast %cst_17 : f32 to vector<16x16xf32>
      %22 = arith.mulf %20, %21 : vector<16x16xf32>
      %23 = arith.truncf %22 : vector<16x16xf32> to vector<16x16xbf16>
      %c0_18 = arith.constant 0 : index
      %c0_19 = arith.constant 0 : index
      %24 = vector.load %arg7[%c0_18, %c0_19] : memref<16x32xbf16, #tpu.memory_space<vmem>>, vector<16x32xbf16>
      %cst_20 = arith.constant dense<0.000000e+00> : vector<16x32xf32>
      %25 = tpu.matmul %23, %24, %cst_20 {dimension_numbers = #tpu.dot_dimension_numbers<[1], [0], [0], [1], [0, 0, 1, 1], [], []>} : vector<16x16xbf16>, vector<16x32xbf16>, vector<16x32xf32> -> vector<16x32xf32>
      %c0_21 = arith.constant 0 : index
      %c0_22 = arith.constant 0 : index
      %26 = vector.load %arg9[%c0_21, %c0_22] : memref<16x32xf32, #tpu.memory_space<vmem>>, vector<16x32xf32>
      %c0_23 = arith.constant 0 : index
      %c0_24 = arith.constant 0 : index
      %27 = vector.load %arg5[%c0_23, %c0_24] : memref<1x32xf32, #tpu.memory_space<vmem>>, vector<1x32xf32>
      %28 = vector.broadcast %27 : vector<1x32xf32> to vector<16x32xf32>
      %29 = arith.addf %26, %28 : vector<16x32xf32>
      %30 = arith.addf %29, %25 : vector<16x32xf32>
      %c0_25 = arith.constant 0 : index
      %c0_26 = arith.constant 0 : index
      %31 = vector.load %arg8[%c0_25, %c0_26] : memref<16x32xf32, #tpu.memory_space<vmem>>, vector<16x32xf32>
      tpu.vector_store %arg8[%c0_25, %c0_26], %30 {strides = array<i32>} : memref<16x32xf32, #tpu.memory_space<vmem>>, vector<16x32xf32>,
    } else {
    }
    return
  }
  func.func @transform_0(%arg0: i32, %arg1: i32, %arg2: i32) -> (i32, i32) {
    %c0_i32 = arith.constant 0 : i32
    return %arg0, %arg2 : i32, i32
  }
  func.func @transform_1(%arg0: i32, %arg1: i32, %arg2: i32) -> (i32, i32) {
    %c0_i32 = arith.constant 0 : i32
    return %arg2, %arg1 : i32, i32
  }
  func.func @transform_2(%arg0: i32, %arg1: i32, %arg2: i32) -> (i32, i32) {
    %c0_i32 = arith.constant 0 : i32
    %c0_i32_0 = arith.constant 0 : i32
    return %c0_i32, %arg1 : i32, i32
  }
  func.func @transform_3(%arg0: i32, %arg1: i32, %arg2: i32) -> (i32, i32) {
    %c0_i32 = arith.constant 0 : i32
    %c0_i32_0 = arith.constant 0 : i32
    return %arg2, %c0_i32 : i32, i32
  }
  func.func @transform_4(%arg0: i32, %arg1: i32, %arg2: i32) -> (i32, i32) {
    %c0_i32 = arith.constant 0 : i32
    %c0_i32_0 = arith.constant 0 : i32
    return %c0_i32, %arg1 : i32, i32
  }
  func.func @transform_5(%arg0: i32, %arg1: i32, %arg2: i32) -> (i32, i32) {
    %c0_i32 = arith.constant 0 : i32
    return %arg0, %arg1 : i32, i32
  }
}

</mosaic_0001>

<llo_original>
// kernel: tpu_custom_call.1
$region0: #{tpu_custom_call.1}
  #allocation0 [shape = 'u32[]', space=smem, size = 0x4, offset = 0x4, fixed_abs, tag = 'smem constant byte address 0x4 - core index']
  #allocation1 [shape = 'u32[72,128]{1,0:T(1,128)}', space=vmem, size = 0x9000, scoped, tag = 'internal scratch']
  #allocation2 [shape = 'f32[16,32]{1,0:T(8,128)}', space=vmem, size = 0x2000, scoped, tag = 'scratch operand']
  #allocation3 [shape = 'f32[16,16]{1,0:T(8,128)}', space=vmem, size = 0x2000, scoped, tag = 'scratch operand']
  %s0 = inlined_call_operand.vmem [shape: bf16[16,32], index: 0, kind: input, shape index: {}]
  %s1 = inlined_call_operand.vmem [shape: bf16[32,32], index: 1, kind: input, shape index: {}]
  %s2 = inlined_call_operand.vmem [shape: f32[1,32], index: 2, kind: input, shape index: {}]
  %s3 = inlined_call_operand.vmem [shape: bf16[32,16], index: 3, kind: input, shape index: {}]
  %s4 = inlined_call_operand.hbm [shape: bf16[16,32], index: 4, kind: input, shape index: {}]
  %s5 = inlined_call_operand.hbm [shape: f32[16,32], index: 5, kind: output, shape index: {}]
  %s6 = sld [smem:[#allocation0]]
  $region50: #{tpu_custom_call.1} parent=0
    _
  %s8 = ssub.s32 1, %s6
  %s9 = scalar_select 0, %s8, %s6
  $region1: #{tpu_custom_call.1} parent=0
    #allocation4 [shape = 'u8[4096]{0}', space=vmem, size = 0x1000, scoped, tag = 'input window, operand 4, single buffered']
    #allocation5 [shape = 's32[1]{0}', space=sflag, size = 0x4, scoped, tag = 'scoped memory for tpu_custom_call.1']
    #allocation6 [shape = 's32[1]{0}', space=sflag, size = 0x4, scoped, tag = 'scoped memory for tpu_custom_call.1']
    #allocation7 [shape = 'u8[8192]{0}', space=vmem, size = 0x2000, scoped, tag = 'output window, operand 0, single buffered']
    %10 = vsyncpa [#allocation5], 0
    %11 = vsyncpa [#allocation6], 0
    // Predicated region
    $region2: #{tpu_custom_call.1} parent=1 // pred_check
      _
    $region3: #{tpu_custom_call.1} parent=1 // pred_check_branch
      %13 = sbr.rel (0) target = $region5
    $region4: #{tpu_custom_call.1} parent=1 // pred_region
      _
    $region5: #{tpu_custom_call.1} parent=1 // pred_fallthru
      _
    // Predicated region
    $region6: #{tpu_custom_call.1} parent=1 // pred_check
      _
    $region7: #{tpu_custom_call.1} parent=1 // pred_check_branch
      %15 = sbr.rel (0) target = $region9
    $region8: #{tpu_custom_call.1} parent=1 // pred_region
      _
    $region9: #{tpu_custom_call.1} parent=1 // pred_fallthru
      _
    // Predicated region
    $region10: #{tpu_custom_call.1} parent=1 // pred_check
      _
    $region11: #{tpu_custom_call.1} parent=1 // pred_check_branch
      %17 = sbr.rel (0) target = $region13
    $region12: #{tpu_custom_call.1} parent=1 // pred_region
      _
    $region13: #{tpu_custom_call.1} parent=1 // pred_fallthru
      _
    // Predicated region
    $region14: #{tpu_custom_call.1} parent=1 // pred_check
      _
    $region15: #{tpu_custom_call.1} parent=1 // pred_check_branch
      %19 = sbr.rel (0) target = $region17
    $region16: #{tpu_custom_call.1} parent=1 // pred_region
      _
    $region17: #{tpu_custom_call.1} parent=1 // pred_fallthru
      _
    // Predicated region
    $region18: #{tpu_custom_call.1} parent=1 // pred_check
      _
    $region19: #{tpu_custom_call.1} parent=1 // pred_check_branch
      %21 = sbr.rel (0) target = $region21
    $region20: #{tpu_custom_call.1} parent=1 // pred_region
      %23 = vsyncadd [#allocation5], 0
      %s24 = sshll.u32 %s4, 4
      %s25 = int_to_ptr.hbm [resolvable:$true] %s24
      %s26 = sshll.u32 [#allocation4], 4
      %s27 = int_to_ptr.vmem [resolvable:$true] %s26
      %32 = dma.hbm_to_vmem [thread:$0]  %s25, 128, %s27, [#allocation5], 64, 64, 4
    $region21: #{tpu_custom_call.1} parent=1 // pred_fallthru
      _
    // Predicated region
    $region22: #{tpu_custom_call.1} parent=1 // pred_check
      _
    $region23: #{tpu_custom_call.1} parent=1 // pred_check_branch
      %34 = sbr.rel (0) target = $region25
    $region24: #{tpu_custom_call.1} parent=1 // pred_region
      %36 = dma.done [#allocation5], 128
    $region25: #{tpu_custom_call.1} parent=1 // pred_fallthru
      _
    %p38 = scmp.eq.s32.totalorder 0, 0
    // Predicated region
    $region26: #{tpu_custom_call.1} parent=1 // pred_check
      %p39 = pneg %p38
    $region27: #{tpu_custom_call.1} parent=1 // pred_check_branch
      %41 = sbr.rel (%p39) target = $region29
    $region28: #{tpu_custom_call.1} parent=1 // pred_region
      %vm42 = vcmask 261120
      %43 = vst.msk [vmem:[#allocation2] sm:$0xff] %vm42, 0.0
      %44 = vst.msk [vmem:[#allocation2 + $0x8] sm:$0xff] %vm42, 0.0
    $region29: #{tpu_custom_call.1} parent=1 // pred_fallthru
      _
    %p45 = scmp.eq.s32.totalorder 0, 0
    %p46 = pnand %p45, %p38
    %p47 = pneg %p46
    // Predicated region
    $region30: #{tpu_custom_call.1} parent=1 // pred_check
      _
    $region31: #{tpu_custom_call.1} parent=1 // pred_check_branch
      %49 = sbr.rel (%p46) target = $region33
    $region32: #{tpu_custom_call.1} parent=1 // pred_region
      %vm50 = vcmask 130048
      %51 = vst.msk [vmem:[#allocation3] sm:$0xff] %vm50, 0.0
      %52 = vst.msk [vmem:[#allocation3 + $0x8] sm:$0xff] %vm50, 0.0
    $region33: #{tpu_custom_call.1} parent=1 // pred_fallthru
      _
    %v53 = vld [vmem:[%s0] sm:$0xf]
    %v54 = vld [vmem:[%s0 + $0x4] sm:$0xf]
    %v55 = vld [vmem:[#allocation2] sm:$0xff]
    %v56 = vld [vmem:[#allocation2 + $0x8] sm:$0xff]
    %v57 = vld [vmem:[%s1] sm:$0xf]
    %v58 = vld [vmem:[%s1 + $0x4] sm:$0xf]
    %v59 = vld [vmem:[%s1 + $0x8] sm:$0xf]
    %v60 = vld [vmem:[%s1 + $0xc] sm:$0xf]
    %v63 = vunpack.c.l.b16 %v53
    %v64 = vunpack.c.l.b16 %v54
    %v65 = vpack.c.b16 %v64, %v63
    %v70 = vunpack.c.l.b16 %v57
    %v71 = vunpack.c.l.b16 %v58
    %v72 = vunpack.c.l.b16 %v59
    %v73 = vunpack.c.l.b16 %v60
    %v74 = vpack.c.b16 %v71, %v70
    %v75 = vpack.c.b16 %v73, %v72
    %vm78 = vcmask 261120
    %v80 = vsel %vm78, %v65, 0
    %82 = vmatpush.bf16.msra.mxu0 0
    %83 = vmatpush.bf16.msra.mxu0 0
    %84 = vmatpush.bf16.msra.mxu0 0
    %85 = vmatpush.bf16.msra.mxu0 0
    %86 = vmatpush.bf16.msra.mxu0 0
    %87 = vmatpush.bf16.msra.mxu0 0
    %88 = vmatpush.bf16.msra.mxu0 %v75
    %89 = vmatpush.bf16.msra.mxu0 %v74
    %90 = vmatmul.bf16.gmra.mxu0 %v80
    %v91 = vpop.f32.mrf.mxu0
    %v92 = vadd.f32 0.0, %v91
    %v93 = vpop.f32.mrf.mxu0
    %v94 = vadd.f32 0.0, %v93
    %95 = vdwg.mxu0
    %v96 = vadd.f32 %v55, %v92
    %v97 = vadd.f32 %v56, %v94
    %98 = vst.msk [vmem:[#allocation2] sm:$0xff] %vm78, %v96
    %99 = vst.msk [vmem:[#allocation2 + $0x8] sm:$0xff] %vm78, %v97
    // Predicated region
    $region34: #{tpu_custom_call.1} parent=1 // pred_check
      %p100 = pneg %p45
    $region35: #{tpu_custom_call.1} parent=1 // pred_check_branch
      %102 = sbr.rel (%p100) target = $region37
    $region36: #{tpu_custom_call.1} parent=1 // pred_region
      %v103 = vld [vmem:[#allocation3] sm:$0xff]
      %v104 = vld [vmem:[#allocation3 + $0x8] sm:$0xff]
      %v105 = vld [vmem:[%s3] sm:$0xf]
      %v106 = vld [vmem:[%s3 + $0x4] sm:$0xf]
      %v107 = vld [vmem:[%s3 + $0x8] sm:$0xf]
      %v108 = vld [vmem:[%s3 + $0xc] sm:$0xf]
      %v113 = vunpack.c.l.b16 %v105
      %v114 = vunpack.c.l.b16 %v106
      %v115 = vunpack.c.l.b16 %v107
      %v116 = vunpack.c.l.b16 %v108
      %v117 = vpack.c.b16 %v114, %v113
      %v118 = vpack.c.b16 %v116, %v115
      %121 = vmatpush.bf16.msra.mxu0 0
      %122 = vmatpush.bf16.msra.mxu0 0
      %123 = vmatpush.bf16.msra.mxu0 0
      %124 = vmatpush.bf16.msra.mxu0 0
      %125 = vmatpush.bf16.msra.mxu0 0
      %126 = vmatpush.bf16.msra.mxu0 0
      %127 = vmatpush.bf16.msra.mxu0 %v118
      %128 = vmatpush.bf16.msra.mxu0 %v117
      %129 = vmatmul.bf16.gmra.mxu0 %v80
      %v130 = vpop.f32.mrf.mxu0
      %v131 = vadd.f32 0.0, %v130
      %v132 = vpop.f32.mrf.mxu0
      %v133 = vadd.f32 0.0, %v132
      %134 = vdwg.mxu0
      %v135 = vadd.f32 %v103, %v131
      %v136 = vadd.f32 %v104, %v133
      %vm137 = vcmask 130048
      %138 = vst.msk [vmem:[#allocation3] sm:$0xff] %vm137, %v135
      %139 = vst.msk [vmem:[#allocation3 + $0x8] sm:$0xff] %vm137, %v136
    $region37: #{tpu_custom_call.1} parent=1 // pred_fallthru
      _
    // Predicated region
    $region38: #{tpu_custom_call.1} parent=1 // pred_check
      %p140 = pneg %p38
    $region39: #{tpu_custom_call.1} parent=1 // pred_check_branch
      %142 = sbr.rel (%p140) target = $region41
    $region40: #{tpu_custom_call.1} parent=1 // pred_region
      %v143 = vld [vmem:[#allocation3] sm:$0xff]
      %v144 = vld [vmem:[#allocation3 + $0x8] sm:$0xff]
      %v145 = vpack.c.bf16 %v144, %v143
      %v146 = vld [vmem:[#allocation4] sm:$0xf]
      %v147 = vld [vmem:[#allocation4 + $0x4] sm:$0xf]
      %v150 = vunpack.c.l.b16 %v146
      %v151 = vunpack.c.l.b16 %v147
      %v152 = vpack.c.b16 %v151, %v150
      %vm154 = vcmask 130048
      %v156 = vsel %vm154, %v145, 0
      %158 = vmatpush.bf16.msra.mxu0 0
      %159 = vmatpush.bf16.msra.mxu0 0
      %160 = vmatpush.bf16.msra.mxu0 0
      %161 = vmatpush.bf16.msra.mxu0 0
      %162 = vmatpush.bf16.msra.mxu0 0
      %163 = vmatpush.bf16.msra.mxu0 0
      %164 = vmatpush.bf16.msra.mxu0 0
      %165 = vmatpush.bf16.msra.mxu0 %v152
      %166 = vmatmul.bf16.gmra.mxu0 %v156
      %v167 = vpop.f32.mrf.mxu0
      %v168 = vadd.f32 0.0, %v167
      %v169 = vpop.f32.mrf.mxu0
      %v170 = vadd.f32 0.0, %v169
      %171 = vdwg.mxu0
      %v172 = vld [vmem:[#allocation2] sm:$0xff]
      %v173 = vld [vmem:[#allocation2 + $0x8] sm:$0xff]
      %v174 = vld [vmem:[%s2] sm:$0x1]
      %v176 = vperm.slane %v174, 0
      %v178 = vadd.f32 %v172, %v176
      %v179 = vadd.f32 %v173, %v176
      %v180 = vadd.f32 %v178, %v168
      %v181 = vadd.f32 %v179, %v170
      %182 = vst.msk [vmem:[#allocation7] sm:$0xff] %vm78, %v180
      %183 = vst.msk [vmem:[#allocation7 + $0x8] sm:$0xff] %vm78, %v181
    $region41: #{tpu_custom_call.1} parent=1 // pred_fallthru
      _
    // Predicated region
    $region42: #{tpu_custom_call.1} parent=1 // pred_check
      _
    $region43: #{tpu_custom_call.1} parent=1 // pred_check_branch
      %185 = sbr.rel (0) target = $region45
    $region44: #{tpu_custom_call.1} parent=1 // pred_region
      %187 = vsyncadd [#allocation6], 0
      %s188 = sshll.u32 [#allocation7], 4
      %s189 = int_to_ptr.vmem [resolvable:$true] %s188
      %s190 = sshll.u32 %s5, 4
      %s191 = int_to_ptr.hbm [resolvable:$true] %s190
      %196 = dma.vmem_to_hbm [thread:$0]  %s189, 256, %s191, [#allocation6], 128, 128, 8
    $region45: #{tpu_custom_call.1} parent=1 // pred_fallthru
      _
    // Predicated region
    $region46: #{tpu_custom_call.1} parent=1 // pred_check
      _
    $region47: #{tpu_custom_call.1} parent=1 // pred_check_branch
      %198 = sbr.rel (0) target = $region49
    $region48: #{tpu_custom_call.1} parent=1 // pred_region
      %200 = dma.done [#allocation6], 256
    $region49: #{tpu_custom_call.1} parent=1 // pred_fallthru
      _
    %201 = vsyncpa [#allocation5], 1
    %202 = vsyncpa [#allocation6], 1

</llo_original>
